<compile_context>
chip_gen: v5e
topology: v5e:2x2
jax: 0.10.0
libtpu: 0.0.40
codegen_flags: <defaults>
</compile_context>

<pallas_src>
import functools

import jax
import jax.numpy as jnp
from jax.experimental import pallas as pl
from jax.experimental.pallas import tpu as pltpu


def _round_up(n, m):
    return ((n + m - 1) // m) * m


def _mlp_softmax_kernel(w2_ref, vec_ref, xT_ref, p1_ref, *, mxu_bf16):
    xT = xT_ref[...]                       # (2, tb) f32
    x0 = xT[0:1, :]                        # (1, tb)
    x1 = xT[1:2, :]                        # (1, tb)

    w1_0 = vec_ref[:, 0:1]                 # (num, 1)
    w1_1 = vec_ref[:, 1:2]                 # (num, 1)
    b1   = vec_ref[:, 2:3]                 # (num, 1)
    b2   = vec_ref[:, 3:4]                 # (num, 1)
    dw   = vec_ref[:, 4:5]                 # (num, 1)  = W3[1,:] - W3[0,:]
    db   = vec_ref[0:1, 5:6]               # (1, 1)    = b3[1]  - b3[0]

    # Layer 1 (in_features=2): contraction depth 2 -> VPU broadcast mul-adds.
    h1 = jnp.maximum(w1_0 * x0 + w1_1 * x1 + b1, 0.0)            # (num, tb)

    # Layer 2 (num x num): the only real matmul, lane-dense (tb-wide) output.
    if mxu_bf16:
        # bf16 operands halve MXU push traffic on v6e/v7x once num >= 128;
        # accumulation stays f32.  (Do NOT int-quantize: v7x MXU has no int modes.)
        h2 = jnp.dot(w2_ref[...].astype(jnp.bfloat16),
                     h1.astype(jnp.bfloat16),
                     preferred_element_type=jnp.float32)
    else:
        h2 = jnp.dot(w2_ref[...], h1, preferred_element_type=jnp.float32)
    h2 = jnp.maximum(h2 + b2, 0.0)                               # (num, tb)

    # Layer 3 + 2-class softmax == stable sigmoid of the logit difference.
    d = jnp.sum(dw * h2, axis=0, keepdims=True) + db             # (1, tb)
    e = jnp.exp(-jnp.abs(d))                                     # EUP, always <= 1
    r = pl.reciprocal(1.0 + e, approx=True)                      # EUP vrcp
    p1 = jnp.where(d >= 0.0, r, e * r)                           # overflow-safe
    p1_ref[...] = p1.astype(p1_ref.dtype)


def _pack_vectors(params):
    """(num, 8) block of all non-w2 parameters (2 zero pad columns)."""
    w1, b1 = params["w1"], params["b1"]        # (num, 2), (num,)
    b2 = params["b2"]                          # (num,)
    w3, b3 = params["w3"], params["b3"]        # (2, num), (2,)
    num = w1.shape[0]
    dw = w3[1, :] - w3[0, :]                                       # (num,)
    db = jnp.full((num,), b3[1] - b3[0], jnp.float32)              # broadcast column
    zeros = jnp.zeros((num,), jnp.float32)
    return jnp.stack(
        [w1[:, 0], w1[:, 1], b1, b2, dw, db, zeros, zeros], axis=1
    ).astype(jnp.float32)                                          # (num, 8)


def _forward_p1(xT, params, block_b):
    """Core: xT (2, B) f32 -> p1 (B,) f32 (softmax class-1 probability)."""
    B = xT.shape[1]
    w2 = params["w2"].astype(jnp.float32)               # (num, num)
    num = w2.shape[0]
    vec = _pack_vectors(params)                          # (num, 8)

    # Batch tile: as large as block_b allows (amortizes the ~0.35us/step fixed
    # cost), but capped so the grid has >=2 steps -> v7x megacore sharding.
    tb = max(128, min(_round_up(block_b, 128), _round_up(-(-B // 2), 128)))
    bp = _round_up(B, tb)
    xT_p = jnp.pad(xT, ((0, 0), (0, bp - B))) if bp != B else xT

    kernel = functools.partial(_mlp_softmax_kernel, mxu_bf16=num >= 128)
    p1 = pl.pallas_call(
        kernel,
        out_shape=jax.ShapeDtypeStruct((1, bp), jnp.float32),
        grid_spec=pltpu.PrefetchScalarGridSpec(
            num_scalar_prefetch=0,
            grid=(bp // tb,),
            in_specs=[
                # w2: lane-aligned, constant index_map -> DMA'd once, resident.
                pl.BlockSpec((num, num), lambda i: (0, 0)),
                # small parameter-vector block, also resident.
                pl.BlockSpec((num, 8), lambda i: (0, 0)),
                # batch tile of x^T, auto double-buffered across the grid.
                pl.BlockSpec((2, tb), lambda i: (0, i)),
            ],
            # p1 only: lane-dense (1, tb) stores, half the output HBM traffic.
            out_specs=pl.BlockSpec((1, tb), lambda i: (0, i)),
        ),
        compiler_params=pltpu.CompilerParams(
            # Batch tiles are independent -> megacore sharding on v7x.
            dimension_semantics=("parallel",)),
    )(w2, vec, xT_p)
    return p1[0, :B]


@functools.partial(jax.jit, static_argnames=("block_b",))
def linear_net2_prob1_T(xT, params, *, block_b=4096):
    """Fast path: xT (2, B) f32 -> softmax(...)[:, 1] of shape (B,).

    Avoids wrapper-side transpose HBM round trips; p0 = 1 - p1 at the consumer.
    """
    return _forward_p1(xT, params, block_b)


@functools.partial(jax.jit, static_argnames=("block_b",))
def linear_net2_forward(x, params, *, block_b=4096):
    """Drop-in LinearNet2.forward: x (B, 2) f32 -> softmax probs (B, 2).

    Note: the (B,2)<->(2,B) transposes here are plain XLA ops outside the
    kernel; prefer linear_net2_prob1_T if the caller can use the transposed
    / p1-only layout.
    """
    p1 = _forward_p1(x.T, params, block_b)
    return jnp.stack([1.0 - p1, p1], axis=1)


def init_params(key, num):
    """Deterministic init matching LinearNet2(num); PyTorch layout w:(out,in), b:(out,)."""
    ks = jax.random.split(key, 6)

    def lin(kw, kb, fan_in, fan_out):
        bound = 1.0 / jnp.sqrt(jnp.float32(fan_in))
        w = jax.random.uniform(kw, (fan_out, fan_in), jnp.float32, -bound, bound)
        b = jax.random.uniform(kb, (fan_out,), jnp.float32, -bound, bound)
        return w, b

    w1, b1 = lin(ks[0], ks[1], 2, num)
    w2, b2 = lin(ks[2], ks[3], num, num)
    w3, b3 = lin(ks[4], ks[5], num, 2)
    return {"w1": w1, "b1": b1, "w2": w2, "b2": b2, "w3": w3, "b3": b3}


def reference_forward(x, params):
    h1 = jnp.maximum(x @ params["w1"].T + params["b1"], 0.0)
    h2 = jnp.maximum(h1 @ params["w2"].T + params["b2"], 0.0)
    logits = h2 @ params["w3"].T + params["b3"]
    return jax.nn.softmax(logits, axis=1)


if __name__ == "__main__":
    key = jax.random.PRNGKey(0)
    k_x, k_p = jax.random.split(key)

    num = 32    # hidden width "num" from LinearNet2(num)
    B = 200     # not a multiple of 128 -> exercises tail padding and the 2-step grid cap

    x = jax.random.normal(k_x, (B, 2), jnp.float32)
    params = init_params(k_p, num)
    ref = reference_forward(x, params)

    # Drop-in (B, 2) -> (B, 2) interface (matches the PyTorch module).
    out = jax.block_until_ready(linear_net2_forward(x, params))
    assert out.shape == (B, 2)
    # softmax rows sum to 1 (exact by construction: p0 = 1 - p1)
    assert bool(jnp.allclose(jnp.sum(out, axis=1), 1.0, atol=1e-5))
    # matches the plain-JAX (PyTorch-equivalent) forward; tol covers approx reciprocal
    assert bool(jnp.allclose(out, ref, atol=5e-3)), float(jnp.max(jnp.abs(out - ref)))

    # Preferred fast path: transposed input, p1-only output.
    p1 = jax.block_until_ready(linear_net2_prob1_T(x.T, params))
    assert p1.shape == (B,)
    assert bool(jnp.allclose(p1, ref[:, 1], atol=5e-3))

    print("KERNEL_OK")
</pallas_src>

<mosaic_0001>
module attributes {stable_mosaic.version = 11 : i64} {
  func.func @_mlp_softmax_kernel(%arg0: i32, %arg1: memref<32x32xf32, #tpu.memory_space<vmem>>, %arg2: memref<32x8xf32, #tpu.memory_space<vmem>>, %arg3: memref<2x128xf32, #tpu.memory_space<vmem>>, %arg4: memref<1x128xf32, #tpu.memory_space<vmem>>) attributes {dimension_semantics = [#tpu.dimension_semantics<parallel>], iteration_bounds = array<i64: 2>, scalar_prefetch = 0 : i64, scratch_operands = 0 : i64, tpu.core_type = #tpu.core_type<tc>, window_params = [{pipeline_mode = #tpu.pipeline_mode<synchronous>, transform_indices = @transform_0, window_bounds = array<i64: 32, 32>}, {pipeline_mode = #tpu.pipeline_mode<synchronous>, transform_indices = @transform_1, window_bounds = array<i64: 32, 8>}, {transform_indices = @transform_2, window_bounds = array<i64: 2, 128>}, {transform_indices = @transform_3, window_bounds = array<i64: 1, 128>}]} {
    %c0 = arith.constant 0 : index
    %c0_0 = arith.constant 0 : index
    %0 = vector.load %arg3[%c0, %c0_0] : memref<2x128xf32, #tpu.memory_space<vmem>>, vector<2x128xf32>
    %1 = vector.extract_strided_slice %0 {offsets = [0, 0], sizes = [1, 128], strides = [1, 1]} : vector<2x128xf32> to vector<1x128xf32>
    %2 = vector.extract_strided_slice %0 {offsets = [1, 0], sizes = [1, 128], strides = [1, 1]} : vector<2x128xf32> to vector<1x128xf32>
    %c0_1 = arith.constant 0 : index
    %c0_2 = arith.constant 0 : index
    %3 = vector.load %arg2[%c0_1, %c0_2] : memref<32x8xf32, #tpu.memory_space<vmem>>, vector<32x1xf32>
    %c0_3 = arith.constant 0 : index
    %c1 = arith.constant 1 : index
    %4 = vector.load %arg2[%c0_3, %c1] : memref<32x8xf32, #tpu.memory_space<vmem>>, vector<32x1xf32>
    %c0_4 = arith.constant 0 : index
    %c2 = arith.constant 2 : index
    %5 = vector.load %arg2[%c0_4, %c2] : memref<32x8xf32, #tpu.memory_space<vmem>>, vector<32x1xf32>
    %c0_5 = arith.constant 0 : index
    %c3 = arith.constant 3 : index
    %6 = vector.load %arg2[%c0_5, %c3] : memref<32x8xf32, #tpu.memory_space<vmem>>, vector<32x1xf32>
    %c0_6 = arith.constant 0 : index
    %c4 = arith.constant 4 : index
    %7 = vector.load %arg2[%c0_6, %c4] : memref<32x8xf32, #tpu.memory_space<vmem>>, vector<32x1xf32>
    %c0_7 = arith.constant 0 : index
    %c5 = arith.constant 5 : index
    %8 = vector.load %arg2[%c0_7, %c5] : memref<32x8xf32, #tpu.memory_space<vmem>>, vector<1x1xf32>
    %9 = vector.broadcast %3 : vector<32x1xf32> to vector<32x128xf32>
    %10 = vector.broadcast %1 : vector<1x128xf32> to vector<32x128xf32>
    %11 = arith.mulf %9, %10 : vector<32x128xf32>
    %12 = vector.broadcast %4 : vector<32x1xf32> to vector<32x128xf32>
    %13 = vector.broadcast %2 : vector<1x128xf32> to vector<32x128xf32>
    %14 = arith.mulf %12, %13 : vector<32x128xf32>
    %15 = arith.addf %11, %14 : vector<32x128xf32>
    %16 = vector.broadcast %5 : vector<32x1xf32> to vector<32x128xf32>
    %17 = arith.addf %15, %16 : vector<32x128xf32>
    %cst = arith.constant 0.000000e+00 : f32
    %18 = vector.broadcast %cst : f32 to vector<32x128xf32>
    %19 = arith.maximumf %17, %18 : vector<32x128xf32>
    %c0_8 = arith.constant 0 : index
    %c0_9 = arith.constant 0 : index
    %20 = vector.load %arg1[%c0_8, %c0_9] : memref<32x32xf32, #tpu.memory_space<vmem>>, vector<32x32xf32>
    %cst_10 = arith.constant dense<0.000000e+00> : vector<32x128xf32>
    %21 = tpu.matmul %20, %19, %cst_10 {dimension_numbers = #tpu.dot_dimension_numbers<[1], [0], [0], [1], [0, 0, 1, 1], [], []>} : vector<32x32xf32>, vector<32x128xf32>, vector<32x128xf32> -> vector<32x128xf32>
    %22 = vector.broadcast %6 : vector<32x1xf32> to vector<32x128xf32>
    %23 = arith.addf %21, %22 : vector<32x128xf32>
    %cst_11 = arith.constant 0.000000e+00 : f32
    %24 = vector.broadcast %cst_11 : f32 to vector<32x128xf32>
    %25 = arith.maximumf %23, %24 : vector<32x128xf32>
    %26 = vector.broadcast %7 : vector<32x1xf32> to vector<32x128xf32>
    %27 = arith.mulf %26, %25 : vector<32x128xf32>
    %cst_12 = arith.constant dense<0.000000e+00> : vector<128xf32>
    %28 = vector.multi_reduction <add>, %27, %cst_12 [0] : vector<32x128xf32> to vector<128xf32>
    %29 = vector.shape_cast %28 : vector<128xf32> to vector<1x128xf32>
    %30 = vector.broadcast %8 : vector<1x1xf32> to vector<1x128xf32>
    %31 = arith.addf %29, %30 : vector<1x128xf32>
    %32 = math.absf %31 : vector<1x128xf32>
    %cst_13 = arith.constant 0.000000e+00 : f32
    %33 = vector.broadcast %cst_13 : f32 to vector<1x128xf32>
    %34 = arith.subf %33, %32 : vector<1x128xf32>
    %35 = math.exp %34 : vector<1x128xf32>
    %cst_14 = arith.constant 1.000000e+00 : f32
    %36 = vector.broadcast %cst_14 : f32 to vector<1x128xf32>
    %37 = arith.addf %36, %35 : vector<1x128xf32>
    %38 = tpu.reciprocal %37 {approx = true} : vector<1x128xf32> -> vector<1x128xf32>
    %cst_15 = arith.constant 0.000000e+00 : f32
    %39 = vector.broadcast %cst_15 : f32 to vector<1x128xf32>
    %40 = arith.cmpf oge, %31, %39 : vector<1x128xf32>
    %41 = arith.mulf %35, %38 : vector<1x128xf32>
    %42 = arith.select %40, %38, %41 : vector<1x128xi1>, vector<1x128xf32>
    %c0_16 = arith.constant 0 : index
    %c0_17 = arith.constant 0 : index
    %43 = vector.load %arg4[%c0_16, %c0_17] : memref<1x128xf32, #tpu.memory_space<vmem>>, vector<1x128xf32>
    tpu.vector_store %arg4[%c0_16, %c0_17], %42 {strides = array<i32>} : memref<1x128xf32, #tpu.memory_space<vmem>>, vector<1x128xf32>,
    return
  }
  func.func @transform_0(%arg0: i32) -> (i32, i32) {
    %c0_i32 = arith.constant 0 : i32
    %c0_i32_0 = arith.constant 0 : i32
    %c0_i32_1 = arith.constant 0 : i32
    return %c0_i32, %c0_i32_0 : i32, i32
  }
  func.func @transform_1(%arg0: i32) -> (i32, i32) {
    %c0_i32 = arith.constant 0 : i32
    %c0_i32_0 = arith.constant 0 : i32
    %c0_i32_1 = arith.constant 0 : i32
    return %c0_i32, %c0_i32_0 : i32, i32
  }
  func.func @transform_2(%arg0: i32) -> (i32, i32) {
    %c0_i32 = arith.constant 0 : i32
    %c0_i32_0 = arith.constant 0 : i32
    return %c0_i32, %arg0 : i32, i32
  }
  func.func @transform_3(%arg0: i32) -> (i32, i32) {
    %c0_i32 = arith.constant 0 : i32
    %c0_i32_0 = arith.constant 0 : i32
    return %c0_i32, %arg0 : i32, i32
  }
}

</mosaic_0001>

<llo_original>
// kernel: linear_net2_forward.1
$region0: #{linear_net2_forward.1}
  #allocation0 [shape = 'u32[]', space=smem, size = 0x4, offset = 0x4, fixed_abs, tag = 'smem constant byte address 0x4 - core index']
  #allocation1 [shape = 'u32[72,128]{1,0:T(1,128)}', space=vmem, size = 0x9000, scoped, tag = 'internal scratch']
  %s0 = inlined_call_operand.vmem [shape: f32[32,32], index: 0, kind: input, shape index: {}]
  %s1 = inlined_call_operand.vmem [shape: f32[32,8], index: 1, kind: input, shape index: {}]
  %s2 = inlined_call_operand.vmem [shape: f32[2,256], index: 2, kind: input, shape index: {}]
  %s3 = inlined_call_operand.vmem [shape: f32[1,256], index: 3, kind: output, shape index: {}]
  %s4 = sld [smem:[#allocation0]]
  $region45: #{linear_net2_forward.1} parent=0
    _
  %s6 = ssub.s32 1, %s4
  %s7 = scalar_select 0, %s6, %s4
  loop: start=0, step=1, limit=4
  $region2: #{linear_net2_forward.1} parent=0 // loop_pre_header
    _
  $region3: #{linear_net2_forward.1} parent=0 // loop_header
    %s9 = sphi 0, %s13
    %p10 = scmp.ge.s32.totalorder %s9, 4
    %s17 = sphi 0, %s17
    %s19 = sphi 0, %s17
    %s20 = sphi 0, %s19
    %s34 = sphi 0, %s20
    %s38 = sphi 0, %s38
    %s40 = sphi 0, %s38
    %s41 = sphi 0, %s40
    %s55 = sphi 0, %s41
    %s61 = sphi 0, %s63
    %s64 = sphi 0, %s61
    %s65 = sphi 0, %s64
    %s81 = sphi 0, %s65
    %s87 = sphi 0, %s89
    %s90 = sphi 0, %s87
    %s91 = sphi 0, %s90
    %s107 = sphi 0, %s91
  $region4: #{linear_net2_forward.1} parent=0 // loop_header_branch
    %12 = sbr.rel (%p10) target = $region8
  $region5: #{linear_net2_forward.1} parent=0 // loop_body
    %s14 = ssub.s32 %s9, 1
    %s15 = ssub.s32 %s9, 2
    %s16 = sadd.s32 %s9, 1
    %s18 = sadd.s32 %s17, 1
    %p21 = scmp.eq.s32.totalorder %s9, 1
    %p22 = scmp.ne.s32.totalorder %s17, %s19
    %p23 = scmp.eq.s32.totalorder %s9, 0
    %p24 = por %p22, %p23
    %p25 = scmp.ne.s32.totalorder %s17, %s19
    %p26 = scmp.eq.s32.totalorder %s14, 1
    %p27 = por %p25, %p26
    %p28 = scmp.ne.s32.totalorder %s19, %s20
    %p29 = scmp.eq.s32.totalorder %s14, 0
    %p30 = por %p28, %p29
    %p31 = scmp.ne.s32.totalorder %s19, %s20
    %p32 = scmp.eq.s32.totalorder %s15, 1
    %p33 = por %p31, %p32
    %p35 = scmp.ne.s32.totalorder %s20, %s34
    %p36 = scmp.eq.s32.totalorder %s15, 0
    %p37 = por %p35, %p36
    %s39 = sadd.s32 %s38, 1
    %p42 = scmp.eq.s32.totalorder %s9, 1
    %p43 = scmp.ne.s32.totalorder %s38, %s40
    %p44 = scmp.eq.s32.totalorder %s9, 0
    %p45 = por %p43, %p44
    %p46 = scmp.ne.s32.totalorder %s38, %s40
    %p47 = scmp.eq.s32.totalorder %s14, 1
    %p48 = por %p46, %p47
    %p49 = scmp.ne.s32.totalorder %s40, %s41
    %p50 = scmp.eq.s32.totalorder %s14, 0
    %p51 = por %p49, %p50
    %p52 = scmp.ne.s32.totalorder %s40, %s41
    %p53 = scmp.eq.s32.totalorder %s15, 1
    %p54 = por %p52, %p53
    %p56 = scmp.ne.s32.totalorder %s41, %s55
    %p57 = scmp.eq.s32.totalorder %s15, 0
    %p58 = por %p56, %p57
    %s59 = ssub.s32 %s9, %s16
    %p60 = scmp.eq.s32.totalorder %s59, 0
    %s62 = sadd.s32 %s61, 1
    %s63 = scalar_select %p60, %s61, %s62
    %p66 = pneg %p60
    %p67 = scmp.eq.s32.totalorder %s9, 1
    %p68 = por %p66, %p67
    %p69 = scmp.ne.s32.totalorder %s61, %s64
    %p70 = scmp.eq.s32.totalorder %s9, 0
    %p71 = por %p69, %p70
    %p72 = scmp.ne.s32.totalorder %s61, %s64
    %p73 = scmp.eq.s32.totalorder %s14, 1
    %p74 = por %p72, %p73
    %p75 = scmp.ne.s32.totalorder %s64, %s65
    %p76 = scmp.eq.s32.totalorder %s14, 0
    %p77 = por %p75, %p76
    %p78 = scmp.ne.s32.totalorder %s64, %s65
    %p79 = scmp.eq.s32.totalorder %s15, 1
    %p80 = por %p78, %p79
    %p82 = scmp.ne.s32.totalorder %s65, %s81
    %p83 = scmp.eq.s32.totalorder %s15, 0
    %p84 = por %p82, %p83
    %s85 = ssub.s32 %s9, %s16
    %p86 = scmp.eq.s32.totalorder %s85, 0
    %s88 = sadd.s32 %s87, 1
    %s89 = scalar_select %p86, %s87, %s88
    %p92 = pneg %p86
    %p93 = scmp.eq.s32.totalorder %s9, 1
    %p94 = por %p92, %p93
    %p95 = scmp.ne.s32.totalorder %s87, %s90
    %p96 = scmp.eq.s32.totalorder %s9, 0
    %p97 = por %p95, %p96
    %p98 = scmp.ne.s32.totalorder %s87, %s90
    %p99 = scmp.eq.s32.totalorder %s14, 1
    %p100 = por %p98, %p99
    %p101 = scmp.ne.s32.totalorder %s90, %s91
    %p102 = scmp.eq.s32.totalorder %s14, 0
    %p103 = por %p101, %p102
    %p104 = scmp.ne.s32.totalorder %s90, %s91
    %p105 = scmp.eq.s32.totalorder %s15, 1
    %p106 = por %p104, %p105
    %p108 = scmp.ne.s32.totalorder %s91, %s107
    %p109 = scmp.eq.s32.totalorder %s15, 0
    %p110 = por %p108, %p109
    %p111 = scmp.le.s32.totalorder 1, %s9
    %p112 = scmp.lt.s32.totalorder %s9, 3
    %p113 = pnand %p111, %p112
    %p114 = pneg %p113
    // Predicated region
    $region9: #{linear_net2_forward.1} parent=5 // pred_check
      _
    $region10: #{linear_net2_forward.1} parent=5 // pred_check_branch
      %116 = sbr.rel (%p113) target = $region12
    $region11: #{linear_net2_forward.1} parent=5 // pred_region
      %s117 = ssub.s32 %s9, 1
      // Predicated region
      $region13: #{linear_net2_forward.1} parent=11 // pred_check
        %p118 = pneg %p30
      $region14: #{linear_net2_forward.1} parent=11 // pred_check_branch
        %120 = sbr.rel (%p118) target = $region16
      $region15: #{linear_net2_forward.1} parent=11 // pred_region
        _
      $region16: #{linear_net2_forward.1} parent=11 // pred_fallthru
        _
      // Predicated region
      $region17: #{linear_net2_forward.1} parent=11 // pred_check
        %p121 = pneg %p51
      $region18: #{linear_net2_forward.1} parent=11 // pred_check_branch
        %123 = sbr.rel (%p121) target = $region20
      $region19: #{linear_net2_forward.1} parent=11 // pred_region
        _
      $region20: #{linear_net2_forward.1} parent=11 // pred_fallthru
        _
    $region12: #{linear_net2_forward.1} parent=5 // pred_fallthru
      _
    %p124 = scmp.lt.s32.totalorder %s9, 2
    // Predicated region
    $region21: #{linear_net2_forward.1} parent=5 // pred_check
      %p125 = pneg %p124
    $region22: #{linear_net2_forward.1} parent=5 // pred_check_branch
      %127 = sbr.rel (%p125) target = $region24
    $region23: #{linear_net2_forward.1} parent=5 // pred_region
      // Predicated region
      $region25: #{linear_net2_forward.1} parent=23 // pred_check
        %p128 = pneg %p71
      $region26: #{linear_net2_forward.1} parent=23 // pred_check_branch
        %130 = sbr.rel (%p128) target = $region28
      $region27: #{linear_net2_forward.1} parent=23 // pred_region
        %p131 = scmp.lt.s32.totalorder %s9, 1
        %s132 = scalar_select %p131, %s9, 1
        %s133 = smul.addr %s132, 2
        %s134 = scalar_lea.vmem %s2, %s133
      $region28: #{linear_net2_forward.1} parent=23 // pred_fallthru
        _
    $region24: #{linear_net2_forward.1} parent=5 // pred_fallthru
      _
    %p135 = scmp.le.s32.totalorder 1, %s9
    %p136 = scmp.lt.s32.totalorder %s9, 3
    %p137 = pnand %p135, %p136
    %p138 = pneg %p137
    // Predicated region
    $region29: #{linear_net2_forward.1} parent=5 // pred_check
      _
    $region30: #{linear_net2_forward.1} parent=5 // pred_check_branch
      %140 = sbr.rel (%p137) target = $region32
    $region31: #{linear_net2_forward.1} parent=5 // pred_region
      %s141 = ssub.s32 %s9, 1
      %p142 = pneg %p30
      %p143 = pneg %p27
      %p144 = pneg %p51
      %p145 = pneg %p48
      %p146 = scmp.lt.s32.totalorder %s14, 1
      %s147 = scalar_select %p146, %s14, 1
      %s148 = smul.addr %s147, 2
      %s149 = scalar_lea.vmem %s2, %s148
      %p150 = pneg %p77
      %p151 = pneg %p74
      %p152 = pneg %p103
      %p153 = pneg %p100
      %p154 = scmp.lt.s32.totalorder %s14, 1
      %s155 = scalar_select %p154, %s14, 1
      %s156 = scalar_lea.vmem %s3, %s155
      %p157 = scmp.lt.s32.totalorder %s14, 1
      %s158 = scalar_select %p157, %s14, 1
      %s159 = smul.addr %s158, 2
      %s160 = scalar_lea.vmem %s2, %s159
      %p161 = scmp.lt.s32.totalorder %s14, 1
      %s162 = scalar_select %p161, %s14, 1
      %s163 = scalar_lea.vmem %s3, %s162
      %v164 = vld [vmem:[%s160] sm:$0x3]
      %v165 = vld [vmem:[%s1] sm:$0xff]
      %v166 = vld [vmem:[%s1 + $0x8] sm:$0xff]
      %v167 = vld [vmem:[%s1 + $0x10] sm:$0xff]
      %v168 = vld [vmem:[%s1 + $0x18] sm:$0xff]
      %v169 = vld [vmem:[%s1] sm:$0x1]
      %171 = vset.pattern.permute.xlu0 0
      %172 = vperm.xlu0 %171, %v165
      %v173 = vpop.permute.xlu0 %172
      %176 = vset.pattern.permute.xlu0 0
      %177 = vperm.xlu0 %176, %v166
      %v178 = vpop.permute.xlu0 %177
      %181 = vset.pattern.permute.xlu0 0
      %182 = vperm.xlu0 %181, %v167
      %v183 = vpop.permute.xlu0 %182
      %186 = vset.pattern.permute.xlu0 0
      %187 = vperm.xlu0 %186, %v168
      %v188 = vpop.permute.xlu0 %187
      %v190 = vperm.slane %v164, 0
      %v191 = vmul.f32 %v173, %v190
      %v192 = vmul.f32 %v178, %v190
      %v193 = vmul.f32 %v183, %v190
      %v194 = vmul.f32 %v188, %v190
      %195 = vset.pattern.permute.xlu0 1
      %196 = vperm.xlu0 %195, %v165
      %v197 = vpop.permute.xlu0 %196
      %199 = vset.pattern.permute.xlu0 1
      %200 = vperm.xlu0 %199, %v166
      %v201 = vpop.permute.xlu0 %200
      %203 = vset.pattern.permute.xlu0 1
      %204 = vperm.xlu0 %203, %v167
      %v205 = vpop.permute.xlu0 %204
      %207 = vset.pattern.permute.xlu0 1
      %208 = vperm.xlu0 %207, %v168
      %v209 = vpop.permute.xlu0 %208
      %v211 = vperm.slane %v164, 1
      %v212 = vmul.f32 %v197, %v211
      %v213 = vmul.f32 %v201, %v211
      %v214 = vmul.f32 %v205, %v211
      %v215 = vmul.f32 %v209, %v211
      %v216 = vadd.f32 %v191, %v212
      %v217 = vadd.f32 %v192, %v213
      %v218 = vadd.f32 %v193, %v214
      %v219 = vadd.f32 %v194, %v215
      %220 = vset.pattern.permute.xlu0 2
      %221 = vperm.xlu0 %220, %v165
      %v222 = vpop.permute.xlu0 %221
      %224 = vset.pattern.permute.xlu0 2
      %225 = vperm.xlu0 %224, %v166
      %v226 = vpop.permute.xlu0 %225
      %228 = vset.pattern.permute.xlu0 2
      %229 = vperm.xlu0 %228, %v167
      %v230 = vpop.permute.xlu0 %229
      %232 = vset.pattern.permute.xlu0 2
      %233 = vperm.xlu0 %232, %v168
      %v234 = vpop.permute.xlu0 %233
      %v236 = vadd.f32 %v216, %v222
      %v237 = vadd.f32 %v217, %v226
      %v238 = vadd.f32 %v218, %v230
      %v239 = vadd.f32 %v219, %v234
      %v240 = vmax.f32 %v236, 0.0
      %v241 = vmax.f32 %v237, 0.0
      %v242 = vmax.f32 %v238, 0.0
      %v243 = vmax.f32 %v239, 0.0
      %v244 = vld [vmem:[%s0] sm:$0xff]
      %v245 = vld [vmem:[%s0 + $0x8] sm:$0xff]
      %v246 = vld [vmem:[%s0 + $0x10] sm:$0xff]
      %v247 = vld [vmem:[%s0 + $0x18] sm:$0xff]
      %248 = vset.pattern.permute.xlu0 3
      %249 = vperm.xlu0 %248, %v165
      %v250 = vpop.permute.xlu0 %249
      %252 = vset.pattern.permute.xlu0 3
      %253 = vperm.xlu0 %252, %v166
      %v254 = vpop.permute.xlu0 %253
      %256 = vset.pattern.permute.xlu0 3
      %257 = vperm.xlu0 %256, %v167
      %v258 = vpop.permute.xlu0 %257
      %260 = vset.pattern.permute.xlu0 3
      %261 = vperm.xlu0 %260, %v168
      %v262 = vpop.permute.xlu0 %261
      %vm264 = vcmask 261120
      %v266 = vsel %vm264, %v244, 0
      %v269 = vsel %vm264, %v245, 0
      %v272 = vsel %vm264, %v246, 0
      %v275 = vsel %vm264, %v247, 0
      %277 = vmatpush.msra.mxu0 0.0
      %278 = vmatpush.msra.mxu0 0.0
      %279 = vmatpush.msra.mxu0 0.0
      %280 = vmatpush.msra.mxu0 0.0
      %281 = vmatpush.msra.mxu0 0.0
      %282 = vmatpush.msra.mxu0 0.0
      %283 = vmatpush.msra.mxu0 0.0
      %284 = vmatpush.msra.mxu0 0.0
      %285 = vmatpush.msra.mxu0 0.0
      %286 = vmatpush.msra.mxu0 0.0
      %287 = vmatpush.msra.mxu0 0.0
      %288 = vmatpush.msra.mxu0 0.0
      %289 = vmatpush.msra.mxu0 %v243
      %290 = vmatpush.msra.mxu0 %v242
      %291 = vmatpush.msra.mxu0 %v241
      %292 = vmatpush.msra.mxu0 %v240
      %293 = vmatmul.f32.gmra.mxu0 %v266
      %v294 = vpop.f32.mrf.mxu0
      %v295 = vadd.f32 %v250, %v294
      %296 = vmatmul.f32.gmra.mxu0 %v269
      %v297 = vpop.f32.mrf.mxu0
      %v298 = vadd.f32 %v254, %v297
      %299 = vmatmul.f32.gmra.mxu0 %v272
      %v300 = vpop.f32.mrf.mxu0
      %v301 = vadd.f32 %v258, %v300
      %302 = vmatmul.f32.gmra.mxu0 %v275
      %v303 = vpop.f32.mrf.mxu0
      %v304 = vadd.f32 %v262, %v303
      %305 = vdwg.mxu0
      %v306 = vmax.f32 %v295, 0.0
      %v307 = vmax.f32 %v298, 0.0
      %v308 = vmax.f32 %v301, 0.0
      %v309 = vmax.f32 %v304, 0.0
      %310 = vset.pattern.permute.xlu0 4
      %311 = vperm.xlu0 %310, %v165
      %v312 = vpop.permute.xlu0 %311
      %314 = vset.pattern.permute.xlu0 4
      %315 = vperm.xlu0 %314, %v166
      %v316 = vpop.permute.xlu0 %315
      %318 = vset.pattern.permute.xlu0 4
      %319 = vperm.xlu0 %318, %v167
      %v320 = vpop.permute.xlu0 %319
      %322 = vset.pattern.permute.xlu0 4
      %323 = vperm.xlu0 %322, %v168
      %v324 = vpop.permute.xlu0 %323
      %v326 = vmul.f32 %v312, %v306
      %v327 = vmul.f32 %v316, %v307
      %v328 = vmul.f32 %v320, %v308
      %v329 = vmul.f32 %v324, %v309
      %v330 = vadd.f32 %v326, %v327
      %v331 = vadd.f32 %v330, %v328
      %v332 = vadd.f32 %v331, %v329
      %v333 = vrot.slane %v332, 4
      %v334 = vadd.f32 %v332, %v333
      %v335 = vrot.slane %v334, 2
      %v336 = vadd.f32 %v334, %v335
      %v337 = vrot.slane %v336, 1
      %v338 = vadd.f32 %v336, %v337
      %340 = vset.pattern.permute.xlu0 5
      %341 = vperm.xlu0 %340, %v169
      %v342 = vpop.permute.xlu0 %341
      %v344 = vadd.f32 %v338, %v342
      %v345 = vand.u32 2147483647, %v344
      %v346 = vsub.f32 0.0, %v345
      %v347 = vmul.f32 %v346, 1.442695
      %v348 = vpow.pop %v347
      %v349 = vadd.f32 %v348, 1.0
      %v350 = vrcp.pop %v349
      %vm351 = vcmp.ge.f32.partialorder %v344, 0.0
      %v352 = vmul.f32 %v348, %v350
      %v353 = vsel %vm351, %v350, %v352
      %354 = vst [vmem:[%s163] sm:$0x1] %v353
      %p355 = scmp.lt.s32.totalorder %s14, 1
      %s356 = scalar_select %p355, %s14, 1
      %s357 = scalar_lea.vmem %s3, %s356
      // Predicated region
      $region33: #{linear_net2_forward.1} parent=31 // pred_check
        %p358 = pneg %p100
      $region34: #{linear_net2_forward.1} parent=31 // pred_check_branch
        %360 = sbr.rel (%p358) target = $region36
      $region35: #{linear_net2_forward.1} parent=31 // pred_region
        _
      $region36: #{linear_net2_forward.1} parent=31 // pred_fallthru
        _
    $region32: #{linear_net2_forward.1} parent=5 // pred_fallthru
      _
    %p361 = scmp.le.s32.totalorder 2, %s9
    // Predicated region
    $region37: #{linear_net2_forward.1} parent=5 // pred_check
      %p362 = pneg %p361
    $region38: #{linear_net2_forward.1} parent=5 // pred_check_branch
      %364 = sbr.rel (%p362) target = $region40
    $region39: #{linear_net2_forward.1} parent=5 // pred_region
      %s365 = ssub.s32 %s9, 2
      // Predicated region
      $region41: #{linear_net2_forward.1} parent=39 // pred_check
        %p366 = pneg %p106
      $region42: #{linear_net2_forward.1} parent=39 // pred_check_branch
        %368 = sbr.rel (%p366) target = $region44
      $region43: #{linear_net2_forward.1} parent=39 // pred_region
        %p369 = scmp.lt.s32.totalorder %s15, 1
        %s370 = scalar_select %p369, %s15, 1
        %s371 = scalar_lea.vmem %s3, %s370
      $region44: #{linear_net2_forward.1} parent=39 // pred_fallthru
        _
    $region40: #{linear_net2_forward.1} parent=5 // pred_fallthru
      _
  $region6: #{linear_net2_forward.1} parent=0 // loop_footer
    %s13 = sadd.s32 1, %s9
  $region7: #{linear_net2_forward.1} parent=0 // loop_footer_branch
    %8 = sbr.rel target = $region3
  $region8: #{linear_net2_forward.1} parent=0 // loop_exit
    _

</llo_original>
